<compile_context>
chip_gen: v5e
topology: v5e:2x2
jax: 0.10.0
libtpu: 0.0.40
codegen_flags: <defaults>
</compile_context>

<pallas_src>
import functools

import jax
import jax.numpy as jnp
from jax.experimental import pallas as pl
from jax.experimental.pallas import tpu as pltpu


# --------------------------------------------------------------------------
# Kernel
# --------------------------------------------------------------------------
def _conv1xn_kernel(x_ref, w_ref, o_ref, *, kernel_size, dilation, padding,
                    w_eff, compute_dtype):
    # x_ref: (C_in, L)      L = tile_h * w_eff, (h, w) flattened onto lanes
    # w_ref: (K, C_out, C_in)
    # o_ref: (C_out, L)     lane-dense output block
    x = x_ref[...]                                    # hoisted single load
    if x.dtype != compute_dtype:
        x = x.astype(compute_dtype)                   # in-kernel cast (no extra HBM pass)
    L = x.shape[-1]

    # Per-lane column index within a row (drives the boundary mask).  Cheap
    # VPU work per grid step; replaces the former mask HBM operand.
    idx = jax.lax.broadcasted_iota(jnp.int32, (1, L), 1)
    if (w_eff & (w_eff - 1)) == 0:                    # power-of-two fast path
        col = jnp.bitwise_and(idx, jnp.int32(w_eff - 1))
    else:
        col = jax.lax.rem(idx, jnp.int32(w_eff))

    acc = jnp.zeros(o_ref.shape, jnp.float32)         # f32 accumulation
    for k in range(kernel_size):                      # static tap loop
        s = k * dilation - padding                    # lane shift of this tap
        if s >= w_eff or s <= -w_eff:                 # tap never hits real data
            continue
        shift = (-s) % L
        # XLU lane rotation instead of a misaligned slice (XLU slot is idle).
        tap = x if shift == 0 else pltpu.roll(x, shift=shift, axis=1)
        if s != 0:
            # zero lanes whose read crossed a row boundary / hit the conv's
            # zero padding (realized via the lane roll wrap-around).
            valid = jnp.logical_and(col + s >= 0, col + s < w_eff)   # (1, L)
            tap = jnp.where(valid, tap, 0)            # vsel, broadcasts over C_in
        acc = acc + jax.lax.dot_general(
            w_ref[k], tap,                            # (C_out,C_in) x (C_in,L)
            dimension_numbers=(((1,), (0,)), ((), ())),
            preferred_element_type=jnp.float32)
    o_ref[...] = acc.astype(o_ref.dtype)


# --------------------------------------------------------------------------
# Generation-aware VMEM configuration
# --------------------------------------------------------------------------
def _tpu_memory_config():
    """Returns (vmem_limit_bytes, tile_budget_bytes, two_tensorcores)."""
    vmem_cap = None
    try:
        info = pltpu.get_tpu_info()
        for name in ("vmem_capacity_bytes", "vmem_bytes", "vmem_size_bytes"):
            v = getattr(info, name, None)
            if v:
                vmem_cap = int(v)
                break
    except Exception:
        vmem_cap = None
    try:
        kind = jax.devices()[0].device_kind.lower()
    except Exception:
        kind = ""
    two_tc = ("v7" in kind) or ("7x" in kind)          # 2 TensorCores per chip

    if vmem_cap is None:
        vmem_cap = 64 * 1024 * 1024                    # conservative: safe everywhere
    if vmem_cap >= 128 * 1024 * 1024:                  # v5e / v6e (128 MiB)
        vmem_limit = 64 * 1024 * 1024
        tile_budget = 40 * 1024 * 1024
    else:                                              # v7x (64 MiB per TC)
        vmem_limit = 48 * 1024 * 1024
        tile_budget = 28 * 1024 * 1024
    return vmem_limit, tile_budget, two_tc


# --------------------------------------------------------------------------
# Tile selection
# --------------------------------------------------------------------------
def _pick_tile_h(n, h, w_eff, c_in, c_out, *, in_itemsize, cdt_itemsize,
                 out_itemsize, vmem_budget_bytes, min_grid_steps):
    """Largest legal h-tile that fits the VMEM budget; optionally shrunk so a
    2-TC chip gets >= min_grid_steps grid steps to parallelize over."""
    # VMEM bytes per h-row of a tile: double-buffered input/output blocks plus
    # in-kernel temporaries (cast x, rolled tap, masked tap, f32 accumulator,
    # iota/mask rows).  Accumulator / output counted at their true widths,
    # independent of compute_dtype.
    per_row = w_eff * (
        2 * c_in * in_itemsize          # x block, double buffered
        + 2 * c_out * out_itemsize      # out block, double buffered
        + 3 * c_in * cdt_itemsize       # x (cast) + rolled + masked tap temps
        + c_out * 4                     # f32 accumulator
        + 8)                            # int32 iota + boolean mask rows
    max_h = max(1, vmem_budget_bytes // per_row)

    def legal(t):
        # Block last dim must be a 128-multiple of lanes, or the full axis.
        return h % t == 0 and ((t * w_eff) % 128 == 0 or t == h)

    legal_tiles = [t for t in range(1, h + 1) if legal(t)]
    fitting = [t for t in legal_tiles if t <= max_h]
    # If even the smallest legal tile busts the budget, take the smallest one
    # (vmem_limit_bytes keeps headroom above the tile budget).
    tile = max(fitting) if fitting else min(legal_tiles)

    if min_grid_steps > 1 and n * (h // tile) < min_grid_steps:
        # Only split for 2-TC (v7x) parts; on 1-TC chips the grid is a serial
        # loop and splitting just adds per-step overhead.
        cands = [t for t in legal_tiles
                 if t < tile and t <= max_h and n * (h // t) >= min_grid_steps]
        if cands:
            tile = max(cands)
    return tile


# --------------------------------------------------------------------------
# Forward wrapper
# --------------------------------------------------------------------------
def cnn1xn_forward(x, weight, *, kernel_size, padding, dilation,
                   compute_dtype=None, out_dtype=None):
    """x: (N, C_in, H, W) NCHW.  weight: (C_out, C_in, 1, K) (PyTorch layout).
    Returns (N, C_out, H, W_out) NCHW, matching
    nn.Conv2d(kernel=(1,K), padding=(0,P), dilation=D, bias=False).

    compute_dtype: optional lower-precision matmul dtype (cast in-kernel; the
    HBM activations stay in their native dtype).  out_dtype: optional output
    store dtype (e.g. bf16) to cut output-store bandwidth.  Defaults keep
    exact f32 module semantics."""
    n, c_in, h, w = x.shape
    c_out = weight.shape[0]
    ksz = kernel_size
    w_out = w + 2 * padding - dilation * (ksz - 1)
    assert w_out >= 1, "invalid conv geometry"

    cdt = jnp.dtype(x.dtype if compute_dtype is None else compute_dtype)
    odt = jnp.dtype(x.dtype if out_dtype is None else out_dtype)

    vmem_limit, tile_budget, two_tc = _tpu_memory_config()

    # ---- row width selection ------------------------------------------------
    # The kernel produces one output column per input column of a row, so the
    # per-row width must cover the output width.
    w_min = max(w, w_out)
    w_eff = w_min
    if (h * w_eff) % 128 != 0:
        # Lane-dense stores are the biggest store-path lever: pad the row
        # width a little (extra columns zero-padded / cropped) when that makes
        # the (H, W_eff) plane a 128-multiple without wasting > ~25% of a row.
        cand = w_min
        while (h * cand) % 128 != 0:
            cand += 1
        if cand - w_min <= max(8, w_min // 4):
            w_eff = cand

    # ---- tiling ---------------------------------------------------------------
    tile_h = _pick_tile_h(
        n, h, w_eff, c_in, c_out,
        in_itemsize=jnp.dtype(x.dtype).itemsize,
        cdt_itemsize=cdt.itemsize,
        out_itemsize=odt.itemsize,
        vmem_budget_bytes=tile_budget,
        min_grid_steps=4 if two_tc else 1)
    blk = tile_h * w_eff

    # ---- HBM-side layout (no extra passes on the common path) ---------------
    if w_eff != w:
        # Uncommon geometries (valid / dilated conv or lane-density pad): one
        # wrapper pad of x (zeros double as the conv's right zero padding) and
        # one output crop below.
        # TODO(synk): fold the pad/crop into kernel index math (separate input
        # / output row strides) if these geometries ever become hot.
        x = jnp.pad(x, ((0, 0), (0, 0), (0, 0), (0, w_eff - w)))
    x_flat = x.reshape(n, c_in, h * w_eff)             # free metadata reshape

    # PyTorch weight (C_out, C_in, 1, K) -> (K, C_out, C_in); tiny array, so
    # double-buffering it (Pallas default) is negligible.
    w_t = jnp.transpose(weight[:, :, 0, :], (2, 0, 1)).astype(cdt)

    kernel = functools.partial(
        _conv1xn_kernel, kernel_size=ksz, dilation=dilation, padding=padding,
        w_eff=w_eff, compute_dtype=cdt)

    out_flat = pl.pallas_call(
        kernel,
        out_shape=jax.ShapeDtypeStruct((n, c_out, h * w_eff), odt),
        grid_spec=pltpu.PrefetchScalarGridSpec(
            num_scalar_prefetch=0,
            grid=(n, h // tile_h),
            in_specs=[
                pl.BlockSpec((None, c_in, blk), lambda i, j: (i, 0, j)),
                pl.BlockSpec((ksz, c_out, c_in), lambda i, j: (0, 0, 0)),
            ],
            out_specs=pl.BlockSpec((None, c_out, blk), lambda i, j: (i, 0, j)),
        ),
        compiler_params=pltpu.CompilerParams(
            dimension_semantics=("parallel", "parallel"),
            vmem_limit_bytes=vmem_limit),
    )(x_flat, w_t)

    out = out_flat.reshape(n, c_out, h, w_eff)
    if w_eff != w_out:
        out = out[..., :w_out]     # only for non-"same" / padded geometries
    return out


# --------------------------------------------------------------------------
# Demo / self-test
# --------------------------------------------------------------------------
if __name__ == "__main__":
    # `deterministic` in the PyTorch module only toggles cudnn determinism —
    # a no-op for this TPU implementation.
    key = jax.random.PRNGKey(0)

    def _make_case(k, n, c_in, h, w, c_out, ksz):
        kx, kw = jax.random.split(k)
        x = jax.random.normal(kx, (n, c_in, h, w), dtype=jnp.float32)
        bound = 1.0 / ((c_in * ksz) ** 0.5)
        wgt = jax.random.uniform(kw, (c_out, c_in, 1, ksz), dtype=jnp.float32,
                                 minval=-bound, maxval=bound)
        return x, wgt

    def _check(x, wgt, ksz, pad, dil):
        out = cnn1xn_forward(x, wgt, kernel_size=ksz, padding=pad, dilation=dil)
        out = jax.block_until_ready(out)
        ref = jax.lax.conv_general_dilated(
            x, wgt, window_strides=(1, 1), padding=((0, 0), (pad, pad)),
            rhs_dilation=(1, dil),
            dimension_numbers=("NCHW", "OIHW", "NCHW"))
        assert out.shape == ref.shape, (out.shape, ref.shape)
        assert jnp.allclose(out, ref, atol=1e-4, rtol=1e-4), "mismatch vs ref"

    k0, k1, k2 = jax.random.split(key, 3)

    # module config: cnn1xn(in=4, out=8, kernel_size=3, padding=1, dilation=1)
    x, wgt = _make_case(k0, 2, 4, 16, 16, 8, 3)
    _check(x, wgt, 3, 1, 1)

    # extra geometries through the same code path:
    #   valid conv (W_out < W, output crop) and dilated conv (D=2, P=2)
    x, wgt = _make_case(k1, 1, 3, 8, 16, 5, 3)
    _check(x, wgt, 3, 0, 1)
    x, wgt = _make_case(k2, 2, 4, 8, 32, 8, 3)
    _check(x, wgt, 3, 2, 2)

    print("KERNEL_OK")
</pallas_src>

<mosaic_0001>
module attributes {stable_mosaic.version = 11 : i64} {
  func.func @_conv1xn_kernel(%arg0: i32, %arg1: i32, %arg2: memref<1x4x256xf32, #tpu.memory_space<vmem>>, %arg3: memref<3x8x4xf32, #tpu.memory_space<vmem>>, %arg4: memref<1x8x256xf32, #tpu.memory_space<vmem>>) attributes {dimension_semantics = [#tpu.dimension_semantics<parallel>, #tpu.dimension_semantics<parallel>], iteration_bounds = array<i64: 2, 1>, scalar_prefetch = 0 : i64, scratch_operands = 0 : i64, tpu.core_type = #tpu.core_type<tc>, window_params = [{transform_indices = @transform_0, window_bounds = array<i64: 1, 4, 256>}, {pipeline_mode = #tpu.pipeline_mode<synchronous>, transform_indices = @transform_1, window_bounds = array<i64: 3, 8, 4>}, {transform_indices = @transform_2, window_bounds = array<i64: 1, 8, 256>}]} {
    %c0 = arith.constant 0 : index
    %c0_0 = arith.constant 0 : index
    %c0_1 = arith.constant 0 : index
    %0 = vector.load %arg2[%c0, %c0_0, %c0_1] : memref<1x4x256xf32, #tpu.memory_space<vmem>>, vector<1x4x256xf32>
    %1 = vector.shape_cast %0 : vector<1x4x256xf32> to vector<4x256xf32>
    %2 = tpu.iota {dimensions = array<i32: 1>} : vector<1x256xi32>
    %c15_i32 = arith.constant 15 : i32
    %3 = vector.broadcast %c15_i32 : i32 to vector<1x256xi32>
    %4 = arith.andi %2, %3 : vector<1x256xi32>
    %cst = arith.constant 0.000000e+00 : f32
    %5 = vector.broadcast %cst : f32 to vector<8x256xf32>
    %c1_i32 = arith.constant 1 : i32
    %6 = tpu.dynamic_rotate %1 by %c1_i32 dim 1 : vector<4x256xf32>, i32 -> vector<4x256xf32>
    %c-1_i32 = arith.constant -1 : i32
    %7 = vector.broadcast %c-1_i32 : i32 to vector<1x256xi32>
    %8 = arith.addi %4, %7 : vector<1x256xi32>
    %c0_i32 = arith.constant 0 : i32
    %9 = vector.broadcast %c0_i32 : i32 to vector<1x256xi32>
    %10 = arith.cmpi sge, %8, %9 : vector<1x256xi32>
    %c-1_i32_2 = arith.constant -1 : i32
    %11 = vector.broadcast %c-1_i32_2 : i32 to vector<1x256xi32>
    %12 = arith.addi %4, %11 : vector<1x256xi32>
    %c16_i32 = arith.constant 16 : i32
    %13 = vector.broadcast %c16_i32 : i32 to vector<1x256xi32>
    %14 = arith.cmpi slt, %12, %13 : vector<1x256xi32>
    %15 = arith.andi %10, %14 : vector<1x256xi1>
    %c0_i32_3 = arith.constant 0 : i32
    %16 = arith.sitofp %c0_i32_3 : i32 to f32
    %17 = vector.shape_cast %15 : vector<1x256xi1> to vector<1x256xi1>
    %18 = vector.broadcast %17 : vector<1x256xi1> to vector<4x256xi1>
    %19 = vector.broadcast %16 : f32 to vector<4x256xf32>
    %20 = arith.select %18, %6, %19 : vector<4x256xi1>, vector<4x256xf32>
    %c0_4 = arith.constant 0 : index
    %c0_5 = arith.constant 0 : index
    %c0_6 = arith.constant 0 : index
    %21 = vector.load %arg3[%c0_4, %c0_5, %c0_6] : memref<3x8x4xf32, #tpu.memory_space<vmem>>, vector<1x8x4xf32>
    %22 = vector.shape_cast %21 : vector<1x8x4xf32> to vector<8x4xf32>
    %cst_7 = arith.constant dense<0.000000e+00> : vector<8x256xf32>
    %23 = tpu.matmul %22, %20, %cst_7 {dimension_numbers = #tpu.dot_dimension_numbers<[1], [0], [0], [1], [0, 0, 1, 1], [], []>} : vector<8x4xf32>, vector<4x256xf32>, vector<8x256xf32> -> vector<8x256xf32>
    %24 = arith.addf %5, %23 : vector<8x256xf32>
    %c1 = arith.constant 1 : index
    %c0_8 = arith.constant 0 : index
    %c0_9 = arith.constant 0 : index
    %25 = vector.load %arg3[%c1, %c0_8, %c0_9] : memref<3x8x4xf32, #tpu.memory_space<vmem>>, vector<1x8x4xf32>
    %26 = vector.shape_cast %25 : vector<1x8x4xf32> to vector<8x4xf32>
    %cst_10 = arith.constant dense<0.000000e+00> : vector<8x256xf32>
    %27 = tpu.matmul %26, %1, %cst_10 {dimension_numbers = #tpu.dot_dimension_numbers<[1], [0], [0], [1], [0, 0, 1, 1], [], []>} : vector<8x4xf32>, vector<4x256xf32>, vector<8x256xf32> -> vector<8x256xf32>
    %28 = arith.addf %24, %27 : vector<8x256xf32>
    %c255_i32 = arith.constant 255 : i32
    %29 = tpu.dynamic_rotate %1 by %c255_i32 dim 1 : vector<4x256xf32>, i32 -> vector<4x256xf32>
    %c1_i32_11 = arith.constant 1 : i32
    %30 = vector.broadcast %c1_i32_11 : i32 to vector<1x256xi32>
    %31 = arith.addi %4, %30 : vector<1x256xi32>
    %c0_i32_12 = arith.constant 0 : i32
    %32 = vector.broadcast %c0_i32_12 : i32 to vector<1x256xi32>
    %33 = arith.cmpi sge, %31, %32 : vector<1x256xi32>
    %c1_i32_13 = arith.constant 1 : i32
    %34 = vector.broadcast %c1_i32_13 : i32 to vector<1x256xi32>
    %35 = arith.addi %4, %34 : vector<1x256xi32>
    %c16_i32_14 = arith.constant 16 : i32
    %36 = vector.broadcast %c16_i32_14 : i32 to vector<1x256xi32>
    %37 = arith.cmpi slt, %35, %36 : vector<1x256xi32>
    %38 = arith.andi %33, %37 : vector<1x256xi1>
    %c0_i32_15 = arith.constant 0 : i32
    %39 = arith.sitofp %c0_i32_15 : i32 to f32
    %40 = vector.shape_cast %38 : vector<1x256xi1> to vector<1x256xi1>
    %41 = vector.broadcast %40 : vector<1x256xi1> to vector<4x256xi1>
    %42 = vector.broadcast %39 : f32 to vector<4x256xf32>
    %43 = arith.select %41, %29, %42 : vector<4x256xi1>, vector<4x256xf32>
    %c2 = arith.constant 2 : index
    %c0_16 = arith.constant 0 : index
    %c0_17 = arith.constant 0 : index
    %44 = vector.load %arg3[%c2, %c0_16, %c0_17] : memref<3x8x4xf32, #tpu.memory_space<vmem>>, vector<1x8x4xf32>
    %45 = vector.shape_cast %44 : vector<1x8x4xf32> to vector<8x4xf32>
    %cst_18 = arith.constant dense<0.000000e+00> : vector<8x256xf32>
    %46 = tpu.matmul %45, %43, %cst_18 {dimension_numbers = #tpu.dot_dimension_numbers<[1], [0], [0], [1], [0, 0, 1, 1], [], []>} : vector<8x4xf32>, vector<4x256xf32>, vector<8x256xf32> -> vector<8x256xf32>
    %47 = arith.addf %28, %46 : vector<8x256xf32>
    %c0_19 = arith.constant 0 : index
    %c0_20 = arith.constant 0 : index
    %c0_21 = arith.constant 0 : index
    %48 = vector.load %arg4[%c0_19, %c0_20, %c0_21] : memref<1x8x256xf32, #tpu.memory_space<vmem>>, vector<1x8x256xf32>
    %49 = vector.shape_cast %48 : vector<1x8x256xf32> to vector<8x256xf32>
    %50 = vector.shape_cast %47 : vector<8x256xf32> to vector<1x8x256xf32>
    tpu.vector_store %arg4[%c0_19, %c0_20, %c0_21], %50 {strides = array<i32>} : memref<1x8x256xf32, #tpu.memory_space<vmem>>, vector<1x8x256xf32>,
    return
  }
  func.func @transform_0(%arg0: i32, %arg1: i32) -> (i32, i32, i32) {
    %c0_i32 = arith.constant 0 : i32
    %c0_i32_0 = arith.constant 0 : i32
    return %arg0, %c0_i32, %arg1 : i32, i32, i32
  }
  func.func @transform_1(%arg0: i32, %arg1: i32) -> (i32, i32, i32) {
    %c0_i32 = arith.constant 0 : i32
    %c0_i32_0 = arith.constant 0 : i32
    %c0_i32_1 = arith.constant 0 : i32
    %c0_i32_2 = arith.constant 0 : i32
    return %c0_i32, %c0_i32_0, %c0_i32_1 : i32, i32, i32
  }
  func.func @transform_2(%arg0: i32, %arg1: i32) -> (i32, i32, i32) {
    %c0_i32 = arith.constant 0 : i32
    %c0_i32_0 = arith.constant 0 : i32
    return %arg0, %c0_i32, %arg1 : i32, i32, i32
  }
}

</mosaic_0001>

<llo_original>
// kernel: tpu_custom_call.1
$region0: #{tpu_custom_call.1}
  #allocation0 [shape = 'u32[]', space=smem, size = 0x4, offset = 0x4, fixed_abs, tag = 'smem constant byte address 0x4 - core index']
  #allocation1 [shape = 'u32[72,128]{1,0:T(1,128)}', space=vmem, size = 0x9000, scoped, tag = 'internal scratch']
  %s0 = inlined_call_operand.vmem [shape: f32[2,4,256], index: 0, kind: input, shape index: {}]
  %s1 = inlined_call_operand.vmem [shape: f32[3,8,4], index: 1, kind: input, shape index: {}]
  %s2 = inlined_call_operand.hbm [shape: f32[2,8,256], index: 2, kind: output, shape index: {}]
  %s3 = sld [smem:[#allocation0]]
  $region41: #{tpu_custom_call.1} parent=0
    _
  %s5 = ssub.s32 1, %s3
  %s6 = scalar_select 0, %s5, %s3
  $region1: #{tpu_custom_call.1} parent=0
    #allocation2 [shape = 'u8[16384]{0}', space=vmem, size = 0x4000, scoped, tag = 'output window, operand 0']
    #allocation3 [shape = 's32[2]{0}', space=sflag, size = 0x8, scoped, tag = 'scoped memory for tpu_custom_call.1']
    %7 = vsyncpa [#allocation3], 0
    %s8 = scalar_lea.sflag [#allocation3], 1
    %9 = vsyncpa %s8, 0
    loop: start=0, step=1, limit=4
    $region2: #{tpu_custom_call.1} parent=1 // loop_pre_header
      _
    $region3: #{tpu_custom_call.1} parent=1 // loop_header
      %s11 = sphi 0, %s15
      %p12 = scmp.ge.s32.totalorder %s11, 4
      %s18 = sphi 0, %s30
      %s19 = sphi 0, %s26
      %s20 = sphi 0, %s18
      %s21 = sphi 0, %s19
      %s22 = sphi 0, %s20
      %s23 = sphi 0, %s21
      %s35 = sphi 0, %s37
      %s38 = sphi 0, %s35
      %s39 = sphi 0, %s38
      %s55 = sphi 0, %s39
      %s59 = sphi 0, %s59
      %s61 = sphi 0, %s59
      %s62 = sphi 0, %s61
      %s76 = sphi 0, %s62
      %s84 = sphi 0, %s86
      %s87 = sphi 0, %s84
      %s88 = sphi 0, %s87
      %s104 = sphi 0, %s88
    $region4: #{tpu_custom_call.1} parent=1 // loop_header_branch
      %14 = sbr.rel (%p12) target = $region8
    $region5: #{tpu_custom_call.1} parent=1 // loop_body
      %s16 = ssub.s32 %s11, 1
      %s17 = ssub.s32 %s11, 2
      %s24 = sadd.s32 1, %s19
      %p25 = scmp.ge.s32.totalorder %s24, 1
      %s26 = scalar_select %p25, 0, %s24
      %s27 = sadd.s32 1, %s18
      %s28 = scalar_select %p25, %s27, %s18
      %p29 = scmp.ge.s32.totalorder %s28, 2
      %s30 = scalar_select %p29, 0, %s28
      %s31 = ssub.s32 %s18, %s30
      %s32 = ssub.s32 %s19, %s26
      %s33 = sor.u32 %s31, %s32
      %p34 = scmp.eq.s32.totalorder %s33, 0
      %s36 = sadd.s32 %s35, 1
      %s37 = scalar_select %p34, %s35, %s36
      %p40 = pneg %p34
      %p41 = scmp.eq.s32.totalorder %s11, 1
      %p42 = por %p40, %p41
      %p43 = scmp.ne.s32.totalorder %s35, %s38
      %p44 = scmp.eq.s32.totalorder %s11, 0
      %p45 = por %p43, %p44
      %p46 = scmp.ne.s32.totalorder %s35, %s38
      %p47 = scmp.eq.s32.totalorder %s16, 1
      %p48 = por %p46, %p47
      %p49 = scmp.ne.s32.totalorder %s38, %s39
      %p50 = scmp.eq.s32.totalorder %s16, 0
      %p51 = por %p49, %p50
      %p52 = scmp.ne.s32.totalorder %s38, %s39
      %p53 = scmp.eq.s32.totalorder %s17, 1
      %p54 = por %p52, %p53
      %p56 = scmp.ne.s32.totalorder %s39, %s55
      %p57 = scmp.eq.s32.totalorder %s17, 0
      %p58 = por %p56, %p57
      %s60 = sadd.s32 %s59, 1
      %p63 = scmp.eq.s32.totalorder %s11, 1
      %p64 = scmp.ne.s32.totalorder %s59, %s61
      %p65 = scmp.eq.s32.totalorder %s11, 0
      %p66 = por %p64, %p65
      %p67 = scmp.ne.s32.totalorder %s59, %s61
      %p68 = scmp.eq.s32.totalorder %s16, 1
      %p69 = por %p67, %p68
      %p70 = scmp.ne.s32.totalorder %s61, %s62
      %p71 = scmp.eq.s32.totalorder %s16, 0
      %p72 = por %p70, %p71
      %p73 = scmp.ne.s32.totalorder %s61, %s62
      %p74 = scmp.eq.s32.totalorder %s17, 1
      %p75 = por %p73, %p74
      %p77 = scmp.ne.s32.totalorder %s62, %s76
      %p78 = scmp.eq.s32.totalorder %s17, 0
      %p79 = por %p77, %p78
      %s80 = ssub.s32 %s18, %s30
      %s81 = ssub.s32 %s19, %s26
      %s82 = sor.u32 %s80, %s81
      %p83 = scmp.eq.s32.totalorder %s82, 0
      %s85 = sadd.s32 %s84, 1
      %s86 = scalar_select %p83, %s84, %s85
      %p89 = pneg %p83
      %p90 = scmp.eq.s32.totalorder %s11, 1
      %p91 = por %p89, %p90
      %p92 = scmp.ne.s32.totalorder %s84, %s87
      %p93 = scmp.eq.s32.totalorder %s11, 0
      %p94 = por %p92, %p93
      %p95 = scmp.ne.s32.totalorder %s84, %s87
      %p96 = scmp.eq.s32.totalorder %s16, 1
      %p97 = por %p95, %p96
      %p98 = scmp.ne.s32.totalorder %s87, %s88
      %p99 = scmp.eq.s32.totalorder %s16, 0
      %p100 = por %p98, %p99
      %p101 = scmp.ne.s32.totalorder %s87, %s88
      %p102 = scmp.eq.s32.totalorder %s17, 1
      %p103 = por %p101, %p102
      %p105 = scmp.ne.s32.totalorder %s88, %s104
      %p106 = scmp.eq.s32.totalorder %s17, 0
      %p107 = por %p105, %p106
      %p108 = scmp.le.s32.totalorder 1, %s11
      %p109 = scmp.lt.s32.totalorder %s11, 3
      %p110 = pnand %p108, %p109
      %p111 = pneg %p110
      // Predicated region
      $region9: #{tpu_custom_call.1} parent=5 // pred_check
        _
      $region10: #{tpu_custom_call.1} parent=5 // pred_check_branch
        %113 = sbr.rel (%p110) target = $region12
      $region11: #{tpu_custom_call.1} parent=5 // pred_region
        %s114 = ssub.s32 %s11, 1
        // Predicated region
        $region13: #{tpu_custom_call.1} parent=11 // pred_check
          %p115 = pneg %p72
        $region14: #{tpu_custom_call.1} parent=11 // pred_check_branch
          %117 = sbr.rel (%p115) target = $region16
        $region15: #{tpu_custom_call.1} parent=11 // pred_region
          _
        $region16: #{tpu_custom_call.1} parent=11 // pred_fallthru
          _
      $region12: #{tpu_custom_call.1} parent=5 // pred_fallthru
        _
      %p118 = scmp.lt.s32.totalorder %s11, 2
      // Predicated region
      $region17: #{tpu_custom_call.1} parent=5 // pred_check
        %p119 = pneg %p118
      $region18: #{tpu_custom_call.1} parent=5 // pred_check_branch
        %121 = sbr.rel (%p119) target = $region20
      $region19: #{tpu_custom_call.1} parent=5 // pred_region
        // Predicated region
        $region21: #{tpu_custom_call.1} parent=19 // pred_check
          %p122 = pneg %p45
        $region22: #{tpu_custom_call.1} parent=19 // pred_check_branch
          %124 = sbr.rel (%p122) target = $region24
        $region23: #{tpu_custom_call.1} parent=19 // pred_region
          %s125 = smul.u32 2, %s19
          %p126 = scmp.lt.s32.totalorder %s18, 1
          %s127 = scalar_select %p126, %s18, 1
          %p128 = scmp.lt.s32.totalorder %s125, 1
          %s129 = scalar_select %p128, %s125, 1
          %s130 = smul.addr %s127, 2
          %s131 = sadd.s32 %s129, %s130
          %s132 = smul.addr %s131, 4
          %s133 = scalar_lea.vmem %s0, %s132
          %s134 = smul.u32 2, %s19
        $region24: #{tpu_custom_call.1} parent=19 // pred_fallthru
          _
      $region20: #{tpu_custom_call.1} parent=5 // pred_fallthru
        _
      %p135 = scmp.le.s32.totalorder 1, %s11
      %p136 = scmp.lt.s32.totalorder %s11, 3
      %p137 = pnand %p135, %p136
      %p138 = pneg %p137
      // Predicated region
      $region25: #{tpu_custom_call.1} parent=5 // pred_check
        _
      $region26: #{tpu_custom_call.1} parent=5 // pred_check_branch
        %140 = sbr.rel (%p137) target = $region28
      $region27: #{tpu_custom_call.1} parent=5 // pred_region
        %s141 = ssub.s32 %s11, 1
        %s142 = smul.u32 2, %s21
        %p143 = scmp.lt.s32.totalorder %s20, 1
        %s144 = scalar_select %p143, %s20, 1
        %p145 = scmp.lt.s32.totalorder %s142, 1
        %s146 = scalar_select %p145, %s142, 1
        %s147 = smul.addr %s144, 2
        %s148 = sadd.s32 %s146, %s147
        %s149 = smul.addr %s148, 4
        %s150 = scalar_lea.vmem %s0, %s149
        %p151 = pneg %p51
        %p152 = pneg %p48
        %p153 = pneg %p72
        %p154 = pneg %p69
        %p155 = pneg %p100
        %p156 = pneg %p97
        %s157 = sand.u32 %s87, 1
        %s158 = scalar_lea.sflag [#allocation3], %s157
        %s159 = sand.u32 %s87, 1
        %s160 = smul.addr %s159, 16
        %s161 = scalar_lea.vmem [#allocation2], %s160
        %s162 = smul.u32 2, %s21
        %p163 = scmp.lt.s32.totalorder %s20, 1
        %s164 = scalar_select %p163, %s20, 1
        %p165 = scmp.lt.s32.totalorder %s162, 1
        %s166 = scalar_select %p165, %s162, 1
        %s167 = smul.addr %s164, 2
        %s168 = sadd.s32 %s166, %s167
        %s169 = smul.addr %s168, 4
        %s170 = scalar_lea.vmem %s0, %s169
        %s171 = smul.u32 2, %s21
        %s172 = smul.u32 2, %s21
        %v173 = vld [vmem:[%s170] sm:$0xff]
        %v174 = vlaneseq
        %v175 = vand.u32 %v174, 127
        %v176 = vadd.s32 %v175, 128
        %v177 = vand.u32 %v175, 15
        %v178 = vand.u32 %v176, 15
        %180 = vst [vmem:[#allocation1] ss:$2 sm:$0xff] %v173
        %v181 = vld.sshfl [vmem:[#allocation1] sm:$0xff pattern:$0x75316420]
        %v182 = vld.sshfl [vmem:[#allocation1 + $0x8] sm:$0xff pattern:$0x75316420]
        %185 = vrot.lane.b32.xlu0 %v181, 1
        %v186 = vpop.permute.xlu0 %185
        %187 = vrot.lane.b32.xlu0 %v182, 1
        %v188 = vpop.permute.xlu0 %187
        %vm189 = vcmp.lt.s32.totalorder %v175, 1
        %v190 = vsel %vm189, %v186, %v188
        %v191 = vsel %vm189, %v188, %v186
        %v192 = vadd.s32 %v177, 4294967295
        %v193 = vadd.s32 %v178, 4294967295
        %vm194 = vcmp.ge.s32.totalorder %v192, 0
        %vm195 = vcmp.ge.s32.totalorder %v193, 0
        %vm196 = vcmp.lt.s32.totalorder %v192, 16
        %vm197 = vcmp.lt.s32.totalorder %v193, 16
        %vm198 = vmand %vm194, %vm196
        %vm199 = vmand %vm195, %vm197
        %v200 = vsel %vm198, 1, 0
        %v201 = vsel %vm199, 1, 0
        %vm202 = vcmp.eq.s32.totalorder %v200, 1
        %vm203 = vcmp.eq.s32.totalorder %v201, 1
        %v204 = vsel %vm202, %v191, 0.0
        %v205 = vsel %vm203, %v190, 0.0
        %v206 = vld [vmem:[%s1] sm:$0xff]
        %s207 = scalar_lea.vmem %s1, 8
        %v208 = vld [vmem:[%s207] sm:$0xff]
        %209 = vst [vmem:[#allocation1] ss:$2 sm:$0xff] %v173
        %v210 = vld.sshfl [vmem:[#allocation1] sm:$0xff pattern:$0x75316420]
        %v211 = vld.sshfl [vmem:[#allocation1 + $0x8] sm:$0xff pattern:$0x75316420]
        %vm212 = vcmask 31744
        %v214 = vsel %vm212, %v208, 0
        %vm216 = vcmask 1043456
        %v217 = vsel %vm216, %v210, 0
        %v219 = vsel %vm216, %v211, 0
        %221 = vmatpush.msra.mxu0 0.0
        %222 = vmatpush.msra.mxu0 0.0
        %223 = vmatpush.msra.mxu0 0.0
        %224 = vmatpush.msra.mxu0 0.0
        %225 = vmatpush.msra.mxu0 0.0
        %226 = vmatpush.msra.mxu0 0.0
        %227 = vmatpush.msra.mxu0 0.0
        %228 = vmatpush.msra.mxu0 0.0
        %229 = vmatpush.msra.mxu0 0.0
        %230 = vmatpush.msra.mxu0 0.0
        %231 = vmatpush.msra.mxu0 0.0
        %232 = vmatpush.msra.mxu0 0.0
        %233 = vmatpush.msra.mxu0 0.0
        %234 = vmatpush.msra.mxu0 0.0
        %235 = vmatpush.msra.mxu0 0.0
        %236 = vmatpush.msra.mxu0 %v217
        %237 = vmatmul.f32.gmra.mxu0 %v214
        %v238 = vpop.f32.mrf.mxu0
        %v239 = vadd.f32 0.0, %v238
        %240 = vdwg.mxu0
        %241 = vmatpush.msra.mxu0 0.0
        %242 = vmatpush.msra.mxu0 0.0
        %243 = vmatpush.msra.mxu0 0.0
        %244 = vmatpush.msra.mxu0 0.0
        %245 = vmatpush.msra.mxu0 0.0
        %246 = vmatpush.msra.mxu0 0.0
        %247 = vmatpush.msra.mxu0 0.0
        %248 = vmatpush.msra.mxu0 0.0
        %249 = vmatpush.msra.mxu0 0.0
        %250 = vmatpush.msra.mxu0 0.0
        %251 = vmatpush.msra.mxu0 0.0
        %252 = vmatpush.msra.mxu0 0.0
        %253 = vmatpush.msra.mxu0 0.0
        %254 = vmatpush.msra.mxu0 0.0
        %255 = vmatpush.msra.mxu0 0.0
        %256 = vmatpush.msra.mxu0 %v219
        %257 = vmatmul.f32.gmra.mxu0 %v214
        %v258 = vpop.f32.mrf.mxu0
        %v259 = vadd.f32 0.0, %v258
        %260 = vdwg.mxu0
        %v262 = vsel %vm212, %v206, 0
        %v265 = vsel %vm216, %v204, 0
        %v268 = vsel %vm216, %v205, 0
        %270 = vmatpush.msra.mxu0 0.0
        %271 = vmatpush.msra.mxu0 0.0
        %272 = vmatpush.msra.mxu0 0.0
        %273 = vmatpush.msra.mxu0 0.0
        %274 = vmatpush.msra.mxu0 0.0
        %275 = vmatpush.msra.mxu0 0.0
        %276 = vmatpush.msra.mxu0 0.0
        %277 = vmatpush.msra.mxu0 0.0
        %278 = vmatpush.msra.mxu0 0.0
        %279 = vmatpush.msra.mxu0 0.0
        %280 = vmatpush.msra.mxu0 0.0
        %281 = vmatpush.msra.mxu0 0.0
        %282 = vmatpush.msra.mxu0 0.0
        %283 = vmatpush.msra.mxu0 0.0
        %284 = vmatpush.msra.mxu0 0.0
        %285 = vmatpush.msra.mxu0 %v265
        %286 = vmatmul.f32.gmra.mxu0 %v262
        %v287 = vpop.f32.mrf.mxu0
        %v288 = vadd.f32 %v239, %v287
        %289 = vdwg.mxu0
        %290 = vmatpush.msra.mxu0 0.0
        %291 = vmatpush.msra.mxu0 0.0
        %292 = vmatpush.msra.mxu0 0.0
        %293 = vmatpush.msra.mxu0 0.0
        %294 = vmatpush.msra.mxu0 0.0
        %295 = vmatpush.msra.mxu0 0.0
        %296 = vmatpush.msra.mxu0 0.0
        %297 = vmatpush.msra.mxu0 0.0
        %298 = vmatpush.msra.mxu0 0.0
        %299 = vmatpush.msra.mxu0 0.0
        %300 = vmatpush.msra.mxu0 0.0
        %301 = vmatpush.msra.mxu0 0.0
        %302 = vmatpush.msra.mxu0 0.0
        %303 = vmatpush.msra.mxu0 0.0
        %304 = vmatpush.msra.mxu0 0.0
        %305 = vmatpush.msra.mxu0 %v268
        %306 = vmatmul.f32.gmra.mxu0 %v262
        %v307 = vpop.f32.mrf.mxu0
        %v308 = vadd.f32 %v259, %v307
        %309 = vdwg.mxu0
        %310 = vst [vmem:[#allocation1] ss:$2 sm:$0xff] %v173
        %v311 = vld.sshfl [vmem:[#allocation1] sm:$0xff pattern:$0x75316420]
        %v312 = vld.sshfl [vmem:[#allocation1 + $0x8] sm:$0xff pattern:$0x75316420]
        %315 = vrot.lane.b32.xlu0 %v311, 127
        %v316 = vpop.permute.xlu0 %315
        %317 = vrot.lane.b32.xlu0 %v312, 127
        %v318 = vpop.permute.xlu0 %317
        %vm319 = vcmp.lt.s32.totalorder %v175, 127
        %v320 = vsel %vm319, %v316, %v318
        %v321 = vsel %vm319, %v318, %v316
        %v322 = vadd.s32 %v177, 1
        %v323 = vadd.s32 %v178, 1
        %vm324 = vcmp.ge.s32.totalorder %v322, 0
        %vm325 = vcmp.ge.s32.totalorder %v323, 0
        %vm326 = vcmp.lt.s32.totalorder %v322, 16
        %vm327 = vcmp.lt.s32.totalorder %v323, 16
        %vm328 = vmand %vm324, %vm326
        %vm329 = vmand %vm325, %vm327
        %v330 = vsel %vm328, 1, 0
        %v331 = vsel %vm329, 1, 0
        %vm332 = vcmp.eq.s32.totalorder %v330, 1
        %vm333 = vcmp.eq.s32.totalorder %v331, 1
        %v334 = vsel %vm332, %v320, 0.0
        %v335 = vsel %vm333, %v321, 0.0
        %s336 = scalar_lea.vmem %s1, 16
        %v337 = vld [vmem:[%s336] sm:$0xff]
        %v339 = vsel %vm212, %v337, 0
        %v342 = vsel %vm216, %v334, 0
        %v345 = vsel %vm216, %v335, 0
        %347 = vmatpush.msra.mxu0 0.0
        %348 = vmatpush.msra.mxu0 0.0
        %349 = vmatpush.msra.mxu0 0.0
        %350 = vmatpush.msra.mxu0 0.0
        %351 = vmatpush.msra.mxu0 0.0
        %352 = vmatpush.msra.mxu0 0.0
        %353 = vmatpush.msra.mxu0 0.0
        %354 = vmatpush.msra.mxu0 0.0
        %355 = vmatpush.msra.mxu0 0.0
        %356 = vmatpush.msra.mxu0 0.0
        %357 = vmatpush.msra.mxu0 0.0
        %358 = vmatpush.msra.mxu0 0.0
        %359 = vmatpush.msra.mxu0 0.0
        %360 = vmatpush.msra.mxu0 0.0
        %361 = vmatpush.msra.mxu0 0.0
        %362 = vmatpush.msra.mxu0 %v342
        %363 = vmatmul.f32.gmra.mxu0 %v339
        %v364 = vpop.f32.mrf.mxu0
        %v365 = vadd.f32 0.0, %v364
        %366 = vdwg.mxu0
        %367 = vmatpush.msra.mxu0 0.0
        %368 = vmatpush.msra.mxu0 0.0
        %369 = vmatpush.msra.mxu0 0.0
        %370 = vmatpush.msra.mxu0 0.0
        %371 = vmatpush.msra.mxu0 0.0
        %372 = vmatpush.msra.mxu0 0.0
        %373 = vmatpush.msra.mxu0 0.0
        %374 = vmatpush.msra.mxu0 0.0
        %375 = vmatpush.msra.mxu0 0.0
        %376 = vmatpush.msra.mxu0 0.0
        %377 = vmatpush.msra.mxu0 0.0
        %378 = vmatpush.msra.mxu0 0.0
        %379 = vmatpush.msra.mxu0 0.0
        %380 = vmatpush.msra.mxu0 0.0
        %381 = vmatpush.msra.mxu0 0.0
        %382 = vmatpush.msra.mxu0 %v345
        %383 = vmatmul.f32.gmra.mxu0 %v339
        %v384 = vpop.f32.mrf.mxu0
        %v385 = vadd.f32 0.0, %v384
        %386 = vdwg.mxu0
        %v387 = vadd.f32 %v288, %v365
        %v388 = vadd.f32 %v308, %v385
        %389 = vst [vmem:[%s161] sm:$0xff] %v387
        %390 = vst [vmem:[%s161 + $0x8] sm:$0xff] %v388
        %s391 = sand.u32 %s87, 1
        %s392 = scalar_lea.sflag [#allocation3], %s391
        %s393 = sand.u32 %s87, 1
        %s394 = smul.addr %s393, 16
        %s395 = scalar_lea.vmem [#allocation2], %s394
        // Predicated region
        $region29: #{tpu_custom_call.1} parent=27 // pred_check
          %p396 = pneg %p97
        $region30: #{tpu_custom_call.1} parent=27 // pred_check_branch
          %398 = sbr.rel (%p396) target = $region32
        $region31: #{tpu_custom_call.1} parent=27 // pred_region
          %s399 = smul.u32 2, %s21
          %401 = vsyncadd %s392, 0
          %s402 = smul.addr %s20, 2
          %s403 = sadd.s32 %s399, %s402
          %s404 = smul.addr %s403, 8
          %s405 = scalar_lea.hbm %s2, %s404
          %s407 = sshll.u32 %s395, 4
          %s408 = int_to_ptr.vmem [resolvable:$true] %s407
          %s409 = sshll.u32 %s405, 4
          %s410 = int_to_ptr.hbm [resolvable:$true] %s409
          %412 = dma.vmem_to_hbm [thread:$0]  %s408, 256, %s410, %s392
        $region32: #{tpu_custom_call.1} parent=27 // pred_fallthru
          _
      $region28: #{tpu_custom_call.1} parent=5 // pred_fallthru
        _
      %p413 = scmp.le.s32.totalorder 2, %s11
      // Predicated region
      $region33: #{tpu_custom_call.1} parent=5 // pred_check
        %p414 = pneg %p413
      $region34: #{tpu_custom_call.1} parent=5 // pred_check_branch
        %416 = sbr.rel (%p414) target = $region36
      $region35: #{tpu_custom_call.1} parent=5 // pred_region
        %s417 = ssub.s32 %s11, 2
        // Predicated region
        $region37: #{tpu_custom_call.1} parent=35 // pred_check
          %p418 = pneg %p103
        $region38: #{tpu_custom_call.1} parent=35 // pred_check_branch
          %420 = sbr.rel (%p418) target = $region40
        $region39: #{tpu_custom_call.1} parent=35 // pred_region
          %s421 = sand.u32 %s88, 1
          %s422 = scalar_lea.sflag [#allocation3], %s421
          %s423 = sand.u32 %s88, 1
          %s424 = smul.addr %s423, 16
          %s425 = scalar_lea.vmem [#allocation2], %s424
          %427 = dma.done %s422, 256
        $region40: #{tpu_custom_call.1} parent=35 // pred_fallthru
          _
      $region36: #{tpu_custom_call.1} parent=5 // pred_fallthru
        _
    $region6: #{tpu_custom_call.1} parent=1 // loop_footer
      %s15 = sadd.s32 1, %s11
    $region7: #{tpu_custom_call.1} parent=1 // loop_footer_branch
      %10 = sbr.rel target = $region3
    $region8: #{tpu_custom_call.1} parent=1 // loop_exit
      _
    %428 = vsyncpa [#allocation3], 1
    %s429 = scalar_lea.sflag [#allocation3], 1
    %430 = vsyncpa %s429, 1

</llo_original>
